<compile_context>
chip_gen: v7x
topology: tpu7x:2x2x1
jax: 0.10.0
libtpu: 0.0.40
codegen_flags: <defaults>
</compile_context>

<pallas_src>
import functools
import math

import jax
import jax.numpy as jnp
from jax.experimental import pallas as pl
from jax.experimental.pallas import tpu as pltpu

_LANES = 128


def _affine_kernel(x_ref, s_ref, b_ref, o_ref):
    # x_ref: (TR, TW) tile in the input dtype; s_ref/b_ref: (1, TW) f32 rows
    # broadcast over batch rows. Compute in f32, store in the output dtype.
    x = x_ref[...].astype(jnp.float32)
    o_ref[...] = (x * s_ref[...] + b_ref[...]).astype(o_ref.dtype)


def _round_up(x, m):
    return ((x + m - 1) // m) * m


def _round_down(x, m):
    return (x // m) * m


def _vmem_cap_bytes():
    # Generation-aware scoped-VMEM ceiling: ~half of physical VMEM,
    # i.e. 64 MiB on v5e/v6e (128 MiB phys) and 32 MiB on v7x (64 MiB phys).
    try:
        phys = getattr(pltpu.get_tpu_info(), "vmem_capacity_bytes", None)
        if phys:
            return max(16 << 20, min(phys // 2, 64 << 20))
    except Exception:
        pass
    return 32 << 20


def _sublane_align(*dtypes):
    # (8,128) tiling rule scales with packing: f32 -> 8, bf16 -> 16, int8 -> 32.
    return max(8 * max(1, 4 // jnp.dtype(d).itemsize) for d in dtypes)


def _pick_width_tile(width, max_lanes=1024):
    # width is a multiple of 128; pick the largest divisor that is a multiple
    # of 128 and <= max_lanes so stores stay unmasked full-lane vst.
    if width <= max_lanes:
        return width
    m = width // _LANES
    best = 1
    for d in range(1, max_lanes // _LANES + 1):
        if m % d == 0:
            best = d
    return _LANES * best


def _pick_row_tile(rows, row_bytes, align, target_tile_bytes):
    t = max(align, _round_down(target_tile_bytes // max(row_bytes, 1), align))
    if rows > align:
        # Guarantee >= 2 grid steps so v7x's two TensorCores both get work,
        # while keeping padding to at most one tile of rows.
        t = min(t, _round_up(-(-rows // 2), align))
    return min(t, _round_up(rows, align))


@functools.partial(
    jax.jit, static_argnames=("batch_tile", "width_tile", "force_pallas"))
def affine_model_forward(logits, scale, bias, *, batch_tile=None,
                         width_tile=None, force_pallas=False):
    """AffineModel.forward for the elementwise ('vector'/'scalar'/'none') configs."""
    # TODO(synk): the scale='matrix' config (logits @ scale + bias) is a matmul
    # and is not implemented by this elementwise kernel.
    B, C = logits.shape
    out_dtype = jnp.result_type(logits.dtype, jnp.asarray(scale).dtype,
                                jnp.asarray(bias).dtype)
    s_row = jnp.broadcast_to(jnp.asarray(scale, jnp.float32).reshape(1, -1), (1, C))
    b_row = jnp.broadcast_to(jnp.asarray(bias, jnp.float32).reshape(1, -1), (1, C))

    # Tiny problems: launch + per-step overhead dominates; use fused XLA math.
    if not force_pallas and B * C * 4 < (1 << 20):
        return (logits.astype(jnp.float32) * s_row + b_row).astype(out_dtype)

    # ---- Lane-dense layout --------------------------------------------------
    x = logits
    if C % _LANES == 0:
        r, rows, width = 1, B, C
        s, b = s_row, b_row
    elif C < _LANES:
        # Fold r rows into one so the last dim is a multiple of 128 lanes
        # (unmasked vst). Pad B so the dense path always triggers.
        r = _LANES // math.gcd(C, _LANES)
        Bp = _round_up(B, r)
        if Bp != B:
            x = jnp.pad(x, ((0, Bp - B), (0, 0)))
        rows, width = Bp // r, r * C
        x = x.reshape(rows, width)
        s = jnp.tile(s_row, (1, r))
        b = jnp.tile(b_row, (1, r))
    else:
        # Wide but not 128-aligned: pad the class axis instead of folding rows.
        r = 1
        width = _round_up(C, _LANES)
        x = jnp.pad(x, ((0, 0), (0, width - C)))
        s = jnp.pad(s_row, ((0, 0), (0, width - C)))
        b = jnp.pad(b_row, ((0, 0), (0, width - C)))
        rows = B

    # ---- Tile selection ------------------------------------------------------
    in_it = jnp.dtype(logits.dtype).itemsize
    out_it = jnp.dtype(out_dtype).itemsize
    align = _sublane_align(logits.dtype, out_dtype)
    vmem_cap = _vmem_cap_bytes()
    target_tile_bytes = (8 << 20) if vmem_cap >= (64 << 20) else (4 << 20)

    if width_tile is None:
        width_tile = _pick_width_tile(width)
    assert width % width_tile == 0 and width_tile % _LANES == 0

    if batch_tile is None:
        batch_tile = _pick_row_tile(rows, width_tile * max(in_it, out_it),
                                    align, target_tile_bytes)
    assert batch_tile % align == 0

    rows_p = _round_up(rows, batch_tile)
    if rows_p != rows:
        x = jnp.pad(x, ((0, rows_p - rows), (0, 0)))
    grid = (rows_p // batch_tile, width // width_tile)

    # ---- VMEM budget: double-buffered in/out tiles + params + f32 temps. ----
    tile_elems = batch_tile * width_tile
    vmem_limit = int((2 * tile_elems * (in_it + out_it)        # 2x in + 2x out
                      + 2 * 2 * 8 * width_tile * 4              # scale/bias slabs
                      + 2 * tile_elems * 4) * 1.25)             # f32 compute temps
    vmem_limit = min(max(vmem_limit, 1 << 20), vmem_cap)

    out = pl.pallas_call(
        _affine_kernel,
        out_shape=jax.ShapeDtypeStruct((rows_p, width), out_dtype),
        grid_spec=pl.GridSpec(
            grid=grid,
            in_specs=[
                pl.BlockSpec((batch_tile, width_tile), lambda i, j: (i, j)),  # logits
                pl.BlockSpec((1, width_tile), lambda i, j: (0, j)),           # scale
                pl.BlockSpec((1, width_tile), lambda i, j: (0, j)),           # bias
            ],
            out_specs=pl.BlockSpec((batch_tile, width_tile), lambda i, j: (i, j)),
        ),
        compiler_params=pltpu.CompilerParams(
            dimension_semantics=("parallel", "parallel"),
            vmem_limit_bytes=vmem_limit,
        ),
    )(x, s, b)

    out = out[:rows]
    if r > 1:
        out = out.reshape(rows * r, C)[:B]
    elif width != C:
        out = out[:, :C]
    return out


if __name__ == "__main__":
    # Shapes consistent with AffineModel(num_classes=16), scale='vector', bias=True.
    batch, num_classes = 8, 16
    key = jax.random.PRNGKey(0)
    k_logits, k_scale, k_bias, k2, k3 = jax.random.split(key, 5)

    logits = jax.random.normal(k_logits, (batch, num_classes), dtype=jnp.float32)
    scale = 1.0 + 0.1 * jax.random.normal(k_scale, (num_classes,), dtype=jnp.float32)
    bias = 0.1 * jax.random.normal(k_bias, (1, num_classes), dtype=jnp.float32)

    ref = logits * scale.reshape(1, -1) + bias

    # Pallas path on the module's tiny shapes (forced past the small-size fast path).
    out = jax.block_until_ready(
        affine_model_forward(logits, scale, bias, force_pallas=True))
    assert out.shape == (batch, num_classes) and out.dtype == jnp.float32
    assert jnp.allclose(out, ref, atol=1e-6, rtol=1e-6), "mismatch (pallas, 8x16)"

    # Default dispatch (tiny-size XLA fast path) must agree.
    out_fast = jax.block_until_ready(affine_model_forward(logits, scale, bias))
    assert jnp.allclose(out_fast, ref, atol=1e-6, rtol=1e-6), "mismatch (fast path)"

    # Ragged larger batch: lane densification + row padding + multi-step grid.
    batch2 = 1003
    logits2 = jax.random.normal(k2, (batch2, num_classes), dtype=jnp.float32)
    ref2 = logits2 * scale.reshape(1, -1) + bias
    out2 = jax.block_until_ready(
        affine_model_forward(logits2, scale, bias, force_pallas=True))
    assert out2.shape == (batch2, num_classes)
    assert jnp.allclose(out2, ref2, atol=1e-6, rtol=1e-6), "mismatch (ragged batch)"

    # bf16 logits: in-kernel upcast, f32 output (PyTorch type promotion).
    batch3 = 64
    logits3 = jax.random.normal(
        k3, (batch3, num_classes), dtype=jnp.float32).astype(jnp.bfloat16)
    ref3 = logits3.astype(jnp.float32) * scale.reshape(1, -1) + bias
    out3 = jax.block_until_ready(
        affine_model_forward(logits3, scale, bias, force_pallas=True))
    assert out3.dtype == jnp.float32
    assert jnp.allclose(out3, ref3, atol=1e-5, rtol=1e-5), "mismatch (bf16 logits)"

    print("KERNEL_OK")
</pallas_src>

<mosaic_0001>
module attributes {stable_mosaic.version = 11 : i64} {
  func.func @_affine_kernel(%arg0: i32, %arg1: i32, %arg2: memref<8x128xf32, #tpu.memory_space<vmem>>, %arg3: memref<1x128xf32, #tpu.memory_space<vmem>>, %arg4: memref<1x128xf32, #tpu.memory_space<vmem>>, %arg5: memref<8x128xf32, #tpu.memory_space<vmem>>) attributes {dimension_semantics = [#tpu.dimension_semantics<parallel>, #tpu.dimension_semantics<parallel>], iteration_bounds = array<i64: 1, 1>, scalar_prefetch = 0 : i64, scratch_operands = 0 : i64, tpu.core_type = #tpu.core_type<tc>, window_params = [{transform_indices = @transform_0, window_bounds = array<i64: 8, 128>}, {transform_indices = @transform_1, window_bounds = array<i64: 1, 128>}, {transform_indices = @transform_2, window_bounds = array<i64: 1, 128>}, {transform_indices = @transform_3, window_bounds = array<i64: 8, 128>}]} {
    %c0 = arith.constant 0 : index
    %c0_0 = arith.constant 0 : index
    %0 = vector.load %arg2[%c0, %c0_0] : memref<8x128xf32, #tpu.memory_space<vmem>>, vector<8x128xf32>
    %c0_1 = arith.constant 0 : index
    %c0_2 = arith.constant 0 : index
    %1 = vector.load %arg3[%c0_1, %c0_2] : memref<1x128xf32, #tpu.memory_space<vmem>>, vector<1x128xf32>
    %2 = vector.broadcast %1 : vector<1x128xf32> to vector<8x128xf32>
    %3 = arith.mulf %0, %2 : vector<8x128xf32>
    %c0_3 = arith.constant 0 : index
    %c0_4 = arith.constant 0 : index
    %4 = vector.load %arg4[%c0_3, %c0_4] : memref<1x128xf32, #tpu.memory_space<vmem>>, vector<1x128xf32>
    %5 = vector.broadcast %4 : vector<1x128xf32> to vector<8x128xf32>
    %6 = arith.addf %3, %5 : vector<8x128xf32>
    %c0_5 = arith.constant 0 : index
    %c0_6 = arith.constant 0 : index
    %7 = vector.load %arg5[%c0_5, %c0_6] : memref<8x128xf32, #tpu.memory_space<vmem>>, vector<8x128xf32>
    tpu.vector_store %arg5[%c0_5, %c0_6], %6 {strides = array<i32>} : memref<8x128xf32, #tpu.memory_space<vmem>>, vector<8x128xf32>,
    return
  }
  func.func @transform_0(%arg0: i32, %arg1: i32) -> (i32, i32) {
    %c0_i32 = arith.constant 0 : i32
    return %arg0, %arg1 : i32, i32
  }
  func.func @transform_1(%arg0: i32, %arg1: i32) -> (i32, i32) {
    %c0_i32 = arith.constant 0 : i32
    %c0_i32_0 = arith.constant 0 : i32
    return %c0_i32, %arg1 : i32, i32
  }
  func.func @transform_2(%arg0: i32, %arg1: i32) -> (i32, i32) {
    %c0_i32 = arith.constant 0 : i32
    %c0_i32_0 = arith.constant 0 : i32
    return %c0_i32, %arg1 : i32, i32
  }
  func.func @transform_3(%arg0: i32, %arg1: i32) -> (i32, i32) {
    %c0_i32 = arith.constant 0 : i32
    return %arg0, %arg1 : i32, i32
  }
}

</mosaic_0001>

<llo_original>
// kernel: affine_model_forward.1
$region0: #{affine_model_forward.1}
  #allocation0 [shape = 'u32[]', space=smem, size = 0x4, offset = 0x4, fixed_abs, tag = 'smem constant byte address 0x4 - core index']
  #allocation1 [shape = 'u32[144,128]{1,0:T(1,128)}', space=vmem, size = 0x12000, scoped, tag = 'internal scratch']
  %s0 = inlined_call_operand.vmem [shape: f32[8,128], index: 0, kind: input, shape index: {}]
  %s1 = inlined_call_operand.vmem [shape: f32[1,128], index: 1, kind: input, shape index: {}]
  %s2 = inlined_call_operand.vmem [shape: f32[1,128], index: 2, kind: input, shape index: {}]
  %s3 = inlined_call_operand.vmem [shape: f32[8,128], index: 3, kind: output, shape index: {}]
  %s4 = sld [smem:[#allocation0]]
  $region22: #{affine_model_forward.1} parent=0
    _
  %s6 = ssub.s32 1, %s4
  %s7 = scalar_select 0, %s6, %s4
  // Predicated region
  $region2: #{affine_model_forward.1} parent=0 // pred_check
    _
  $region3: #{affine_model_forward.1} parent=0 // pred_check_branch
    %9 = sbr.rel (0) target = $region5
  $region4: #{affine_model_forward.1} parent=0 // pred_region
    _
  $region5: #{affine_model_forward.1} parent=0 // pred_fallthru
    _
  // Predicated region
  $region6: #{affine_model_forward.1} parent=0 // pred_check
    _
  $region7: #{affine_model_forward.1} parent=0 // pred_check_branch
    %11 = sbr.rel (0) target = $region9
  $region8: #{affine_model_forward.1} parent=0 // pred_region
    _
  $region9: #{affine_model_forward.1} parent=0 // pred_fallthru
    _
  // Predicated region
  $region10: #{affine_model_forward.1} parent=0 // pred_check
    _
  $region11: #{affine_model_forward.1} parent=0 // pred_check_branch
    %13 = sbr.rel (0) target = $region13
  $region12: #{affine_model_forward.1} parent=0 // pred_region
    _
  $region13: #{affine_model_forward.1} parent=0 // pred_fallthru
    _
  %v14 = vld [vmem:[%s0] sm:$0xff]
  %v15 = vld [vmem:[%s1] sm:$0x1]
  %v17 = vlaneseq
  %v18 = vshrl.u32 %v17, 7
  %v19 = vsub.s32 0, %v18
  %v20 = vrot.slane %v15, %v19
  %v22 = vmul.f32 %v14, %v20
  %v23 = vld [vmem:[%s2] sm:$0x1]
  %v25 = vlaneseq
  %v26 = vshrl.u32 %v25, 7
  %v27 = vsub.s32 0, %v26
  %v28 = vrot.slane %v23, %v27
  %v30 = vadd.f32 %v22, %v28
  %31 = vst [vmem:[%s3] sm:$0xff] %v30
  // Predicated region
  $region14: #{affine_model_forward.1} parent=0 // pred_check
    _
  $region15: #{affine_model_forward.1} parent=0 // pred_check_branch
    %33 = sbr.rel (0) target = $region17
  $region16: #{affine_model_forward.1} parent=0 // pred_region
    _
  $region17: #{affine_model_forward.1} parent=0 // pred_fallthru
    _
  // Predicated region
  $region18: #{affine_model_forward.1} parent=0 // pred_check
    _
  $region19: #{affine_model_forward.1} parent=0 // pred_check_branch
    %35 = sbr.rel (0) target = $region21
  $region20: #{affine_model_forward.1} parent=0 // pred_region
    _
  $region21: #{affine_model_forward.1} parent=0 // pred_fallthru
    _

</llo_original>
